<compile_context>
chip_gen: v7x
topology: tpu7x:2x2x1
jax: 0.10.0
libtpu: 0.0.40
codegen_flags: <defaults>
</compile_context>

<pallas_src>
import numpy as np

import jax
import jax.numpy as jnp
from jax.experimental import pallas as pl
from jax.experimental.pallas import tpu as pltpu  # noqa: F401  (TPU backend)


PATCH = 4
EMBED_DIM = 32          # D
TEXT_DIM = 16
HS_N = 128              # lane-dense width of the fused hypernet+sim matmul
_MASK_VALUE = -1e30     # block-diagonal attention mask fill

D = EMBED_DIM

# K=32 weight slab column offsets (no sub-slice crosses a 128-lane tile edge)
_W_PD, _W_MF, _W_KV, _W_HS = 0, D, 2 * D, 4 * D          # widths: 32,32,64,128
_W32_COLS = _W_HS + HS_N                                  # 256

# bias slab column offsets (b_hs first so its 128-wide slice is tile-aligned)
_B_HS, _B_PE, _B_PD, _B_MF, _B_TQ, _B_KV = 0, 128, 160, 192, 224, 256
_BIAS_COLS = _B_KV + 2 * D                                # 320


# ----------------------------------------------------------------------------
# Fused Pallas kernel: whole forward pass in a single gridless launch
# ----------------------------------------------------------------------------

def _m_fused_kernel(x_ref, txt_ref, w48_ref, w32_ref, b_ref, mbias_ref,
                    out_ref):
    f32 = jnp.float32
    maskw = mbias_ref.shape[1]                       # B * Np

    def dense(x, w, b, relu=False):
        y = jnp.dot(x, w, preferred_element_type=f32) + b
        return jnp.maximum(y, 0.0) if relu else y

    # ---- image_encoder: patch embedding (batch folded into rows) ------------
    img = dense(x_ref[...], w48_ref[:, 0:D], b_ref[:, _B_PE:_B_PE + D])

    # ---- pixel_decoder.forward_features: fusion -> mask_features ------------
    msf = dense(img, w32_ref[:, _W_PD:_W_PD + D],
                b_ref[:, _B_PD:_B_PD + D], relu=True)
    feat = dense(msf, w32_ref[:, _W_MF:_W_MF + D],
                 b_ref[:, _B_MF:_B_MF + D], relu=True)           # mask_features

    # ---- prompt_encoder + query projection (folded; attn scale folded in) ---
    q = dense(txt_ref[...], w48_ref[:, D:2 * D], b_ref[:, _B_TQ:_B_TQ + D])

    # ---- mask_decoder: fused k/v projection ---------------------------------
    kv = dense(feat, w32_ref[:, _W_KV:_W_KV + 2 * D],
               b_ref[:, _B_KV:_B_KV + 2 * D])                     # (B*Np, 2D)
    k = kv[:, :D]
    v = kv[:, D:]

    # ---- cross attention over the full B*Np token axis ----------------------
    s = jax.lax.dot_general(q, k, (((1,), (1,)), ((), ())),
                            preferred_element_type=f32)           # (B, B*Np)
    s = s + mbias_ref[...]                                        # block-diag bias
    s = s - jnp.max(s, axis=-1, keepdims=True)
    p = jnp.exp(s)
    p = p * pl.reciprocal(jnp.sum(p, axis=-1, keepdims=True), approx=True)
    attn = jnp.dot(p, v, preferred_element_type=f32)              # (B, D)

    # ---- fused hypernet + similarity head (one lane-padded MXU pass) --------
    hs = dense(attn, w32_ref[:, _W_HS:_W_HS + HS_N],
               b_ref[:, _B_HS:_B_HS + HS_N])                      # (B, 128)
    hyper = jnp.maximum(hs[:, :D], 0.0)                           # hypernet (relu)

    # mask logits of every query against every token (per-image diagonal block
    # is extracted in the wrapper), followed by the raw hypernet/sim columns.
    out_ref[:, :maskw] = jax.lax.dot_general(
        hyper, feat, (((1,), (1,)), ((), ())), preferred_element_type=f32)
    out_ref[:, maskw:] = hs


# ----------------------------------------------------------------------------
# Parameters (deterministic init, identical semantics to the reference)
# ----------------------------------------------------------------------------

def init_params(key, in_chans=3):
    ks = jax.random.split(key, 10)
    pdim = in_chans * PATCH * PATCH

    def w(k, shape, scale):
        return jax.random.normal(k, shape, jnp.float32) * scale

    return {
        # image encoder (patch embedding)
        "w_pe": w(ks[0], (pdim, D), 0.05), "b_pe": jnp.zeros((1, D), jnp.float32),
        # pixel decoder (1x1 conv fusion + mask-feature head)
        "w_pd": w(ks[1], (D, D), 0.1), "b_pd": jnp.zeros((1, D), jnp.float32),
        "w_mf": w(ks[2], (D, D), 0.1), "b_mf": jnp.zeros((1, D), jnp.float32),
        # prompt encoder (text projection)
        "w_txt": w(ks[3], (TEXT_DIM, D), 0.1), "b_txt": jnp.zeros((1, D), jnp.float32),
        # mask decoder (q/k/v projections, hypernet, similarity head)
        "w_q": w(ks[4], (D, D), 0.1), "b_q": jnp.zeros((1, D), jnp.float32),
        "w_k": w(ks[5], (D, D), 0.1), "b_k": jnp.zeros((1, D), jnp.float32),
        "w_v": w(ks[6], (D, D), 0.1), "b_v": jnp.zeros((1, D), jnp.float32),
        "w_hyper": w(ks[7], (D, D), 0.1), "b_hyper": jnp.zeros((1, D), jnp.float32),
        "w_sim": w(ks[8], (D, 1), 0.1), "b_sim": jnp.zeros((1, 1), jnp.float32),
    }


def pack_params(params):
    """One-time composition/packing of the 18 raw tensors into 3 VMEM slabs."""
    scale = 1.0 / (D ** 0.5)
    pdim = params["w_pe"].shape[0]

    # prompt chain fold (text proj @ q proj), attention scale folded in
    w_txt_q = (params["w_txt"] @ params["w_q"]) * scale                   # (Td, D)
    b_txt_q = (params["b_txt"] @ params["w_q"] + params["b_q"]) * scale   # (1, D)

    # fused k/v projection
    w_kv = jnp.concatenate([params["w_k"], params["w_v"]], axis=1)        # (D, 2D)
    b_kv = jnp.concatenate([params["b_k"], params["b_v"]], axis=1)        # (1, 2D)

    # fused hypernet + similarity head, lane-padded to 128 columns
    w_hs = jnp.concatenate(
        [params["w_hyper"], params["w_sim"],
         jnp.zeros((D, HS_N - D - 1), jnp.float32)], axis=1)              # (D, 128)
    b_hs = jnp.concatenate(
        [params["b_hyper"], params["b_sim"],
         jnp.zeros((1, HS_N - D - 1), jnp.float32)], axis=1)              # (1, 128)

    # K=48 slab: [w_pe | w_txt_q (rows zero-padded to pdim)]
    w_txt_q_pad = jnp.concatenate(
        [w_txt_q, jnp.zeros((pdim - TEXT_DIM, D), jnp.float32)], axis=0)
    w48 = jnp.concatenate([params["w_pe"], w_txt_q_pad], axis=1)          # (pdim, 2D)

    # K=32 slab: [w_pd | w_mf | w_kv | w_hs]
    w32 = jnp.concatenate([params["w_pd"], params["w_mf"], w_kv, w_hs],
                          axis=1)                                         # (D, 256)

    # bias slab: [b_hs | b_pe | b_pd | b_mf | b_txt_q | b_kv]
    bias = jnp.concatenate([b_hs, params["b_pe"], params["b_pd"],
                            params["b_mf"], b_txt_q, b_kv], axis=1)       # (1, 320)
    assert bias.shape[1] == _BIAS_COLS and w32.shape[1] == _W32_COLS
    return {"w48": w48, "w32": w32, "bias": bias}


# ----------------------------------------------------------------------------
# Forward
# ----------------------------------------------------------------------------

@jax.jit
def forward(packed, batched_images, batched_sents):
    """batched_images: (B, C, H, W) NCHW float32.
       batched_sents:  (B, L, TEXT_DIM) float32 (token embeddings).
       Returns (low_res_masks: (B, 1, Hf, Wf), sim_pred: (B, 1))."""
    B, C, H, W = batched_images.shape
    Hf, Wf = H // PATCH, W // PATCH
    Np = Hf * Wf
    pdim = C * PATCH * PATCH
    maskw = B * Np

    # ---- patchify (XLA glue, fused under jit) --------------------------------
    x = jnp.transpose(batched_images, (0, 2, 3, 1))                  # NHWC
    x = x.reshape(B, Hf, PATCH, Wf, PATCH, C)
    x = jnp.transpose(x, (0, 1, 3, 2, 4, 5)).reshape(B * Np, pdim)

    # prompt pooling (prompt_encoder stand-in): mean over the token axis,
    # zero-padded to pdim columns so it contracts against the K=48 weight slab
    txt = jnp.mean(batched_sents, axis=1)                            # (B, Td)
    txt = jnp.pad(txt, ((0, 0), (0, pdim - TEXT_DIM)))               # (B, pdim)

    # compile-time constant block-diagonal additive attention bias
    row = np.arange(B)[:, None]
    col = np.arange(maskw)[None, :] // Np
    mbias = jnp.asarray(np.where(row == col, 0.0, _MASK_VALUE), np.float32)

    # Single gridless pallas_call: 6 operands, 1 lane-dense output, all VMEM.
    out = pl.pallas_call(
        _m_fused_kernel,
        out_shape=jax.ShapeDtypeStruct((B, maskw + HS_N), jnp.float32),
    )(x, txt, packed["w48"], packed["w32"], packed["bias"], mbias)

    # vectorized per-image (block-diagonal) mask extraction
    masks_full = out[:, :maskw].reshape(B, B, Np)
    low_res = masks_full[jnp.arange(B), jnp.arange(B)]               # (B, Np)
    low_res_masks = low_res.reshape(B, 1, Hf, Wf)
    sim_pred = out[:, maskw + D:maskw + D + 1]                       # (B, 1)
    return low_res_masks, sim_pred


# ----------------------------------------------------------------------------
# Main
# ----------------------------------------------------------------------------

if __name__ == "__main__":
    key = jax.random.PRNGKey(0)
    k_img, k_txt, k_par = jax.random.split(key, 3)

    B, C, H, W = 2, 3, 32, 32     # NCHW, as the PyTorch module would receive
    L = 8                         # text sequence length

    batched_images = jax.random.normal(k_img, (B, C, H, W), jnp.float32)
    batched_sents = jax.random.normal(k_txt, (B, L, TEXT_DIM), jnp.float32)

    params = init_params(k_par, in_chans=C)
    packed = pack_params(params)   # one-time weight composition/packing

    low_res_masks, sim_pred = forward(packed, batched_images, batched_sents)
    jax.block_until_ready((low_res_masks, sim_pred))

    assert low_res_masks.shape == (B, 1, H // PATCH, W // PATCH)
    assert sim_pred.shape == (B, 1)
    print("KERNEL_OK")
</pallas_src>

<mosaic_0001>
module attributes {stable_mosaic.version = 11 : i64} {
  func.func @_m_fused_kernel(%arg0: memref<128x48xf32, #tpu.memory_space<vmem>>, %arg1: memref<2x48xf32, #tpu.memory_space<vmem>>, %arg2: memref<48x64xf32, #tpu.memory_space<vmem>>, %arg3: memref<32x256xf32, #tpu.memory_space<vmem>>, %arg4: memref<1x320xf32, #tpu.memory_space<vmem>>, %arg5: memref<2x128xf32, #tpu.memory_space<vmem>>, %arg6: memref<2x256xf32, #tpu.memory_space<vmem>>) attributes {dimension_semantics = [], scalar_prefetch = 0 : i64, scratch_operands = 0 : i64, tpu.core_type = #tpu.core_type<tc>} {
    %c0 = arith.constant 0 : index
    %c0_0 = arith.constant 0 : index
    %0 = vector.load %arg0[%c0, %c0_0] : memref<128x48xf32, #tpu.memory_space<vmem>>, vector<128x48xf32>
    %c0_1 = arith.constant 0 : index
    %c0_2 = arith.constant 0 : index
    %1 = vector.load %arg2[%c0_1, %c0_2] : memref<48x64xf32, #tpu.memory_space<vmem>>, vector<48x32xf32>
    %c0_3 = arith.constant 0 : index
    %c128 = arith.constant 128 : index
    %2 = vector.load %arg4[%c0_3, %c128] : memref<1x320xf32, #tpu.memory_space<vmem>>, vector<1x32xf32>
    %cst = arith.constant dense<0.000000e+00> : vector<128x32xf32>
    %3 = tpu.matmul %0, %1, %cst {dimension_numbers = #tpu.dot_dimension_numbers<[1], [0], [0], [1], [0, 0, 1, 1], [], []>} : vector<128x48xf32>, vector<48x32xf32>, vector<128x32xf32> -> vector<128x32xf32>
    %4 = vector.broadcast %2 : vector<1x32xf32> to vector<128x32xf32>
    %5 = arith.addf %3, %4 : vector<128x32xf32>
    %c0_4 = arith.constant 0 : index
    %c0_5 = arith.constant 0 : index
    %6 = vector.load %arg3[%c0_4, %c0_5] : memref<32x256xf32, #tpu.memory_space<vmem>>, vector<32x32xf32>
    %c0_6 = arith.constant 0 : index
    %c160 = arith.constant 160 : index
    %7 = vector.load %arg4[%c0_6, %c160] : memref<1x320xf32, #tpu.memory_space<vmem>>, vector<1x32xf32>
    %cst_7 = arith.constant dense<0.000000e+00> : vector<128x32xf32>
    %8 = tpu.matmul %5, %6, %cst_7 {dimension_numbers = #tpu.dot_dimension_numbers<[1], [0], [0], [1], [0, 0, 1, 1], [], []>} : vector<128x32xf32>, vector<32x32xf32>, vector<128x32xf32> -> vector<128x32xf32>
    %9 = vector.broadcast %7 : vector<1x32xf32> to vector<128x32xf32>
    %10 = arith.addf %8, %9 : vector<128x32xf32>
    %cst_8 = arith.constant 0.000000e+00 : f32
    %11 = vector.broadcast %cst_8 : f32 to vector<128x32xf32>
    %12 = arith.maximumf %10, %11 : vector<128x32xf32>
    %c0_9 = arith.constant 0 : index
    %c32 = arith.constant 32 : index
    %13 = vector.load %arg3[%c0_9, %c32] : memref<32x256xf32, #tpu.memory_space<vmem>>, vector<32x32xf32>
    %c0_10 = arith.constant 0 : index
    %c192 = arith.constant 192 : index
    %14 = vector.load %arg4[%c0_10, %c192] : memref<1x320xf32, #tpu.memory_space<vmem>>, vector<1x32xf32>
    %cst_11 = arith.constant dense<0.000000e+00> : vector<128x32xf32>
    %15 = tpu.matmul %12, %13, %cst_11 {dimension_numbers = #tpu.dot_dimension_numbers<[1], [0], [0], [1], [0, 0, 1, 1], [], []>} : vector<128x32xf32>, vector<32x32xf32>, vector<128x32xf32> -> vector<128x32xf32>
    %16 = vector.broadcast %14 : vector<1x32xf32> to vector<128x32xf32>
    %17 = arith.addf %15, %16 : vector<128x32xf32>
    %cst_12 = arith.constant 0.000000e+00 : f32
    %18 = vector.broadcast %cst_12 : f32 to vector<128x32xf32>
    %19 = arith.maximumf %17, %18 : vector<128x32xf32>
    %c0_13 = arith.constant 0 : index
    %c0_14 = arith.constant 0 : index
    %20 = vector.load %arg1[%c0_13, %c0_14] : memref<2x48xf32, #tpu.memory_space<vmem>>, vector<2x48xf32>
    %c0_15 = arith.constant 0 : index
    %c32_16 = arith.constant 32 : index
    %21 = vector.load %arg2[%c0_15, %c32_16] : memref<48x64xf32, #tpu.memory_space<vmem>>, vector<48x32xf32>
    %c0_17 = arith.constant 0 : index
    %c224 = arith.constant 224 : index
    %22 = vector.load %arg4[%c0_17, %c224] : memref<1x320xf32, #tpu.memory_space<vmem>>, vector<1x32xf32>
    %cst_18 = arith.constant dense<0.000000e+00> : vector<2x32xf32>
    %23 = tpu.matmul %20, %21, %cst_18 {dimension_numbers = #tpu.dot_dimension_numbers<[1], [0], [0], [1], [0, 0, 1, 1], [], []>} : vector<2x48xf32>, vector<48x32xf32>, vector<2x32xf32> -> vector<2x32xf32>
    %24 = vector.broadcast %22 : vector<1x32xf32> to vector<2x32xf32>
    %25 = arith.addf %23, %24 : vector<2x32xf32>
    %c0_19 = arith.constant 0 : index
    %c64 = arith.constant 64 : index
    %26 = vector.load %arg3[%c0_19, %c64] : memref<32x256xf32, #tpu.memory_space<vmem>>, vector<32x64xf32>
    %c0_20 = arith.constant 0 : index
    %c256 = arith.constant 256 : index
    %27 = vector.load %arg4[%c0_20, %c256] : memref<1x320xf32, #tpu.memory_space<vmem>>, vector<1x64xf32>
    %cst_21 = arith.constant dense<0.000000e+00> : vector<128x64xf32>
    %28 = tpu.matmul %19, %26, %cst_21 {dimension_numbers = #tpu.dot_dimension_numbers<[1], [0], [0], [1], [0, 0, 1, 1], [], []>} : vector<128x32xf32>, vector<32x64xf32>, vector<128x64xf32> -> vector<128x64xf32>
    %29 = vector.broadcast %27 : vector<1x64xf32> to vector<128x64xf32>
    %30 = arith.addf %28, %29 : vector<128x64xf32>
    %31 = vector.extract_strided_slice %30 {offsets = [0, 0], sizes = [128, 32], strides = [1, 1]} : vector<128x64xf32> to vector<128x32xf32>
    %32 = vector.extract_strided_slice %30 {offsets = [0, 32], sizes = [128, 32], strides = [1, 1]} : vector<128x64xf32> to vector<128x32xf32>
    %cst_22 = arith.constant dense<0.000000e+00> : vector<2x128xf32>
    %33 = tpu.matmul %25, %31, %cst_22 {dimension_numbers = #tpu.dot_dimension_numbers<[1], [1], [0], [0], [0, 0, 1, 0], [], []>} : vector<2x32xf32>, vector<128x32xf32>, vector<2x128xf32> -> vector<2x128xf32>
    %c0_23 = arith.constant 0 : index
    %c0_24 = arith.constant 0 : index
    %34 = vector.load %arg5[%c0_23, %c0_24] : memref<2x128xf32, #tpu.memory_space<vmem>>, vector<2x128xf32>
    %35 = arith.addf %33, %34 : vector<2x128xf32>
    %cst_25 = arith.constant dense<0xFF800000> : vector<2xf32>
    %36 = vector.multi_reduction <maximumf>, %35, %cst_25 [1] : vector<2x128xf32> to vector<2xf32>
    %37 = vector.shape_cast %36 : vector<2xf32> to vector<2x1xf32>
    %38 = vector.broadcast %37 : vector<2x1xf32> to vector<2x128xf32>
    %39 = arith.subf %35, %38 : vector<2x128xf32>
    %40 = math.exp %39 : vector<2x128xf32>
    %cst_26 = arith.constant dense<0.000000e+00> : vector<2xf32>
    %41 = vector.multi_reduction <add>, %40, %cst_26 [1] : vector<2x128xf32> to vector<2xf32>
    %42 = vector.shape_cast %41 : vector<2xf32> to vector<2x1xf32>
    %43 = tpu.reciprocal %42 {approx = true} : vector<2x1xf32> -> vector<2x1xf32>
    %44 = vector.broadcast %43 : vector<2x1xf32> to vector<2x128xf32>
    %45 = arith.mulf %40, %44 : vector<2x128xf32>
    %cst_27 = arith.constant dense<0.000000e+00> : vector<2x32xf32>
    %46 = tpu.matmul %45, %32, %cst_27 {dimension_numbers = #tpu.dot_dimension_numbers<[1], [0], [0], [1], [0, 0, 1, 1], [], []>} : vector<2x128xf32>, vector<128x32xf32>, vector<2x32xf32> -> vector<2x32xf32>
    %c0_28 = arith.constant 0 : index
    %c128_29 = arith.constant 128 : index
    %47 = vector.load %arg3[%c0_28, %c128_29] : memref<32x256xf32, #tpu.memory_space<vmem>>, vector<32x128xf32>
    %c0_30 = arith.constant 0 : index
    %c0_31 = arith.constant 0 : index
    %48 = vector.load %arg4[%c0_30, %c0_31] : memref<1x320xf32, #tpu.memory_space<vmem>>, vector<1x128xf32>
    %cst_32 = arith.constant dense<0.000000e+00> : vector<2x128xf32>
    %49 = tpu.matmul %46, %47, %cst_32 {dimension_numbers = #tpu.dot_dimension_numbers<[1], [0], [0], [1], [0, 0, 1, 1], [], []>} : vector<2x32xf32>, vector<32x128xf32>, vector<2x128xf32> -> vector<2x128xf32>
    %50 = vector.broadcast %48 : vector<1x128xf32> to vector<2x128xf32>
    %51 = arith.addf %49, %50 : vector<2x128xf32>
    %52 = vector.extract_strided_slice %51 {offsets = [0, 0], sizes = [2, 32], strides = [1, 1]} : vector<2x128xf32> to vector<2x32xf32>
    %cst_33 = arith.constant 0.000000e+00 : f32
    %53 = vector.broadcast %cst_33 : f32 to vector<2x32xf32>
    %54 = arith.maximumf %52, %53 : vector<2x32xf32>
    %cst_34 = arith.constant dense<0.000000e+00> : vector<2x128xf32>
    %55 = tpu.matmul %54, %19, %cst_34 {dimension_numbers = #tpu.dot_dimension_numbers<[1], [1], [0], [0], [0, 0, 1, 0], [], []>} : vector<2x32xf32>, vector<128x32xf32>, vector<2x128xf32> -> vector<2x128xf32>
    %c0_35 = arith.constant 0 : index
    %c0_36 = arith.constant 0 : index
    %56 = vector.load %arg6[%c0_35, %c0_36] : memref<2x256xf32, #tpu.memory_space<vmem>>, vector<2x128xf32>
    tpu.vector_store %arg6[%c0_35, %c0_36], %55 {strides = array<i32>} : memref<2x256xf32, #tpu.memory_space<vmem>>, vector<2x128xf32>,
    %c0_37 = arith.constant 0 : index
    %c128_38 = arith.constant 128 : index
    %57 = vector.load %arg6[%c0_37, %c128_38] : memref<2x256xf32, #tpu.memory_space<vmem>>, vector<2x128xf32>
    tpu.vector_store %arg6[%c0_37, %c128_38], %51 {strides = array<i32>} : memref<2x256xf32, #tpu.memory_space<vmem>>, vector<2x128xf32>,
    return
  }
}

</mosaic_0001>

<llo_original>
// kernel: forward.1
$region0: #{forward.1}
  #allocation0 [shape = 'u32[]', space=smem, size = 0x4, offset = 0x4, fixed_abs, tag = 'smem constant byte address 0x4 - core index']
  #allocation1 [shape = 'u32[144,128]{1,0:T(1,128)}', space=vmem, size = 0x12000, scoped, tag = 'internal scratch']
  %s0 = inlined_call_operand.vmem [shape: f32[128,48], index: 0, kind: input, shape index: {}]
  %s1 = inlined_call_operand.vmem [shape: f32[2,48], index: 1, kind: input, shape index: {}]
  %s2 = inlined_call_operand.vmem [shape: f32[48,64], index: 2, kind: input, shape index: {}]
  %s3 = inlined_call_operand.vmem [shape: f32[32,256], index: 3, kind: input, shape index: {}]
  %s4 = inlined_call_operand.vmem [shape: f32[1,320], index: 4, kind: input, shape index: {}]
  %s5 = inlined_call_operand.vmem [shape: f32[2,128], index: 5, kind: input, shape index: {}]
  %s6 = inlined_call_operand.vmem [shape: f32[2,256], index: 6, kind: output, shape index: {}]
  %s7 = sld [smem:[#allocation0]]
  $region34: #{forward.1} parent=0
    _
  %s9 = ssub.s32 1, %s7
  %s10 = scalar_select 0, %s9, %s7
  // Predicated region
  $region2: #{forward.1} parent=0 // pred_check
    _
  $region3: #{forward.1} parent=0 // pred_check_branch
    %12 = sbr.rel (0) target = $region5
  $region4: #{forward.1} parent=0 // pred_region
    _
  $region5: #{forward.1} parent=0 // pred_fallthru
    _
  // Predicated region
  $region6: #{forward.1} parent=0 // pred_check
    _
  $region7: #{forward.1} parent=0 // pred_check_branch
    %14 = sbr.rel (0) target = $region9
  $region8: #{forward.1} parent=0 // pred_region
    _
  $region9: #{forward.1} parent=0 // pred_fallthru
    _
  // Predicated region
  $region10: #{forward.1} parent=0 // pred_check
    _
  $region11: #{forward.1} parent=0 // pred_check_branch
    %16 = sbr.rel (0) target = $region13
  $region12: #{forward.1} parent=0 // pred_region
    _
  $region13: #{forward.1} parent=0 // pred_fallthru
    _
  // Predicated region
  $region14: #{forward.1} parent=0 // pred_check
    _
  $region15: #{forward.1} parent=0 // pred_check_branch
    %18 = sbr.rel (0) target = $region17
  $region16: #{forward.1} parent=0 // pred_region
    _
  $region17: #{forward.1} parent=0 // pred_fallthru
    _
  // Predicated region
  $region18: #{forward.1} parent=0 // pred_check
    _
  $region19: #{forward.1} parent=0 // pred_check_branch
    %20 = sbr.rel (0) target = $region21
  $region20: #{forward.1} parent=0 // pred_region
    _
  $region21: #{forward.1} parent=0 // pred_fallthru
    _
  // Predicated region
  $region22: #{forward.1} parent=0 // pred_check
    _
  $region23: #{forward.1} parent=0 // pred_check_branch
    %22 = sbr.rel (0) target = $region25
  $region24: #{forward.1} parent=0 // pred_region
    _
  $region25: #{forward.1} parent=0 // pred_fallthru
    _
  %v23 = vld [vmem:[%s0] sm:$0xff]
  %v24 = vld [vmem:[%s0 + $0x8] sm:$0xff]
  %v25 = vld [vmem:[%s0 + $0x10] sm:$0xff]
  %v26 = vld [vmem:[%s0 + $0x18] sm:$0xff]
  %v27 = vld [vmem:[%s0 + $0x20] sm:$0xff]
  %v28 = vld [vmem:[%s0 + $0x28] sm:$0xff]
  %v29 = vld [vmem:[%s0 + $0x30] sm:$0xff]
  %v30 = vld [vmem:[%s0 + $0x38] sm:$0xff]
  %v31 = vld [vmem:[%s0 + $0x40] sm:$0xff]
  %v32 = vld [vmem:[%s0 + $0x48] sm:$0xff]
  %v33 = vld [vmem:[%s0 + $0x50] sm:$0xff]
  %v34 = vld [vmem:[%s0 + $0x58] sm:$0xff]
  %v35 = vld [vmem:[%s0 + $0x60] sm:$0xff]
  %v36 = vld [vmem:[%s0 + $0x68] sm:$0xff]
  %v37 = vld [vmem:[%s0 + $0x70] sm:$0xff]
  %v38 = vld [vmem:[%s0 + $0x78] sm:$0xff]
  %v39 = vld [vmem:[%s2] sm:$0xff]
  %v40 = vld [vmem:[%s2 + $0x8] sm:$0xff]
  %v41 = vld [vmem:[%s2 + $0x10] sm:$0xff]
  %v42 = vld [vmem:[%s2 + $0x18] sm:$0xff]
  %v43 = vld [vmem:[%s2 + $0x20] sm:$0xff]
  %v44 = vld [vmem:[%s2 + $0x28] sm:$0xff]
  %v45 = vld [vmem:[%s4 + $0x1] sm:$0x1]
  %v47 = vlaneseq
  %v48 = vshrl.u32 %v47, 7
  %v49 = vsub.s32 0, %v48
  %v50 = vrot.slane %v45, %v49
  %vm52 = vcmask 392192
  %v54 = vsel %vm52, %v23, 0
  %v57 = vsel %vm52, %v24, 0
  %v60 = vsel %vm52, %v25, 0
  %v63 = vsel %vm52, %v26, 0
  %v66 = vsel %vm52, %v27, 0
  %v69 = vsel %vm52, %v28, 0
  %v72 = vsel %vm52, %v29, 0
  %v75 = vsel %vm52, %v30, 0
  %v78 = vsel %vm52, %v31, 0
  %v81 = vsel %vm52, %v32, 0
  %v84 = vsel %vm52, %v33, 0
  %v87 = vsel %vm52, %v34, 0
  %v90 = vsel %vm52, %v35, 0
  %v93 = vsel %vm52, %v36, 0
  %v96 = vsel %vm52, %v37, 0
  %v99 = vsel %vm52, %v38, 0
  %101 = vmatprep.subr.mxu0 0.0
  %102 = vmatpush1.msra.mxu0 %v39
  %103 = vmatprep.subr.mxu0 0.0
  %104 = vmatpush1.msra.mxu0 %v40
  %105 = vmatprep.subr.mxu0 0.0
  %106 = vmatpush1.msra.mxu0 %v41
  %107 = vmatprep.subr.mxu0 0.0
  %108 = vmatpush1.msra.mxu0 %v42
  %109 = vmatprep.subr.mxu0 0.0
  %110 = vmatpush1.msra.mxu0 %v43
  %111 = vmatprep.subr.mxu0 0.0
  %112 = vmatpush1.msra.mxu0 %v44
  %113 = vmatprep.subr.mxu0 0.0
  %114 = vmatpush1.msra.mxu0 0.0
  %115 = vmatprep.subr.mxu0 0.0
  %116 = vmatpush1.msra.mxu0 0.0
  %117 = vmatprep.subr.mxu0 0.0
  %118 = vmatpush1.msra.mxu0 0.0
  %119 = vmatprep.subr.mxu0 0.0
  %120 = vmatpush1.msra.mxu0 0.0
  %121 = vmatprep.subr.mxu0 0.0
  %122 = vmatpush1.msra.mxu0 0.0
  %123 = vmatprep.subr.mxu0 0.0
  %124 = vmatpush1.msra.mxu0 0.0
  %125 = vmatprep.subr.mxu0 0.0
  %126 = vmatpush1.msra.mxu0 0.0
  %127 = vmatprep.subr.mxu0 0.0
  %128 = vmatpush1.msra.mxu0 0.0
  %129 = vmatprep.subr.mxu0 0.0
  %130 = vmatpush1.msra.mxu0 0.0
  %131 = vmatprep.subr.mxu0 0.0
  %132 = vmatpush1.msra.mxu0 0.0
  %133 = vmatprep.subr.mxu0 0.0
  %134 = vmatpush1.msra.mxu0 0.0
  %135 = vmatprep.subr.mxu0 0.0
  %136 = vmatpush1.msra.mxu0 0.0
  %137 = vmatprep.subr.mxu0 0.0
  %138 = vmatpush1.msra.mxu0 0.0
  %139 = vmatprep.subr.mxu0 0.0
  %140 = vmatpush1.msra.mxu0 0.0
  %141 = vmatprep.subr.mxu0 0.0
  %142 = vmatpush1.msra.mxu0 0.0
  %143 = vmatprep.subr.mxu0 0.0
  %144 = vmatpush1.msra.mxu0 0.0
  %145 = vmatprep.subr.mxu0 0.0
  %146 = vmatpush1.msra.mxu0 0.0
  %147 = vmatprep.subr.mxu0 0.0
  %148 = vmatpush1.msra.mxu0 0.0
  %149 = vmatprep.subr.mxu0 0.0
  %150 = vmatpush1.msra.mxu0 0.0
  %151 = vmatprep.subr.mxu0 0.0
  %152 = vmatpush1.msra.mxu0 0.0
  %153 = vmatprep.subr.mxu0 0.0
  %154 = vmatpush1.msra.mxu0 0.0
  %155 = vmatprep.subr.mxu0 0.0
  %156 = vmatpush1.msra.mxu0 0.0
  %157 = vmatprep.subr.mxu0 0.0
  %158 = vmatpush1.msra.mxu0 0.0
  %159 = vmatprep.subr.mxu0 0.0
  %160 = vmatpush1.msra.mxu0 0.0
  %161 = vmatprep.subr.mxu0 0.0
  %162 = vmatpush1.msra.mxu0 0.0
  %163 = vmatprep.subr.mxu0 0.0
  %164 = vmatpush1.msra.mxu0 0.0
  %165 = vmatprep.mubr.f32.mxu0 0.0
  %166 = vmatmul.mubr.f32.gmra.mrb[0].mxu0 %v54
  %v167 = vpop.f32.mrb[0].mxu0
  %v168 = vadd.f32 %v50, %v167
  %v169 = vpop.f32.mrb[0].mxu0
  %170 = vmatprep.mubr.f32.mxu0 0.0
  %171 = vmatmul.mubr.f32.gmra.mrb[0].mxu0 %v57
  %v172 = vpop.f32.mrb[0].mxu0
  %v173 = vadd.f32 %v50, %v172
  %v174 = vpop.f32.mrb[0].mxu0
  %175 = vmatprep.mubr.f32.mxu0 0.0
  %176 = vmatmul.mubr.f32.gmra.mrb[0].mxu0 %v60
  %v177 = vpop.f32.mrb[0].mxu0
  %v178 = vadd.f32 %v50, %v177
  %v179 = vpop.f32.mrb[0].mxu0
  %180 = vmatprep.mubr.f32.mxu0 0.0
  %181 = vmatmul.mubr.f32.gmra.mrb[0].mxu0 %v63
  %v182 = vpop.f32.mrb[0].mxu0
  %v183 = vadd.f32 %v50, %v182
  %v184 = vpop.f32.mrb[0].mxu0
  %185 = vmatprep.mubr.f32.mxu0 0.0
  %186 = vmatmul.mubr.f32.gmra.mrb[0].mxu0 %v66
  %v187 = vpop.f32.mrb[0].mxu0
  %v188 = vadd.f32 %v50, %v187
  %v189 = vpop.f32.mrb[0].mxu0
  %190 = vmatprep.mubr.f32.mxu0 0.0
  %191 = vmatmul.mubr.f32.gmra.mrb[0].mxu0 %v69
  %v192 = vpop.f32.mrb[0].mxu0
  %v193 = vadd.f32 %v50, %v192
  %v194 = vpop.f32.mrb[0].mxu0
  %195 = vmatprep.mubr.f32.mxu0 0.0
  %196 = vmatmul.mubr.f32.gmra.mrb[0].mxu0 %v72
  %v197 = vpop.f32.mrb[0].mxu0
  %v198 = vadd.f32 %v50, %v197
  %v199 = vpop.f32.mrb[0].mxu0
  %200 = vmatprep.mubr.f32.mxu0 0.0
  %201 = vmatmul.mubr.f32.gmra.mrb[0].mxu0 %v75
  %v202 = vpop.f32.mrb[0].mxu0
  %v203 = vadd.f32 %v50, %v202
  %v204 = vpop.f32.mrb[0].mxu0
  %205 = vmatprep.mubr.f32.mxu0 0.0
  %206 = vmatmul.mubr.f32.gmra.mrb[0].mxu0 %v78
  %v207 = vpop.f32.mrb[0].mxu0
  %v208 = vadd.f32 %v50, %v207
  %v209 = vpop.f32.mrb[0].mxu0
  %210 = vmatprep.mubr.f32.mxu0 0.0
  %211 = vmatmul.mubr.f32.gmra.mrb[0].mxu0 %v81
  %v212 = vpop.f32.mrb[0].mxu0
  %v213 = vadd.f32 %v50, %v212
  %v214 = vpop.f32.mrb[0].mxu0
  %215 = vmatprep.mubr.f32.mxu0 0.0
  %216 = vmatmul.mubr.f32.gmra.mrb[0].mxu0 %v84
  %v217 = vpop.f32.mrb[0].mxu0
  %v218 = vadd.f32 %v50, %v217
  %v219 = vpop.f32.mrb[0].mxu0
  %220 = vmatprep.mubr.f32.mxu0 0.0
  %221 = vmatmul.mubr.f32.gmra.mrb[0].mxu0 %v87
  %v222 = vpop.f32.mrb[0].mxu0
  %v223 = vadd.f32 %v50, %v222
  %v224 = vpop.f32.mrb[0].mxu0
  %225 = vmatprep.mubr.f32.mxu0 0.0
  %226 = vmatmul.mubr.f32.gmra.mrb[0].mxu0 %v90
  %v227 = vpop.f32.mrb[0].mxu0
  %v228 = vadd.f32 %v50, %v227
  %v229 = vpop.f32.mrb[0].mxu0
  %230 = vmatprep.mubr.f32.mxu0 0.0
  %231 = vmatmul.mubr.f32.gmra.mrb[0].mxu0 %v93
  %v232 = vpop.f32.mrb[0].mxu0
  %v233 = vadd.f32 %v50, %v232
  %v234 = vpop.f32.mrb[0].mxu0
  %235 = vmatprep.mubr.f32.mxu0 0.0
  %236 = vmatmul.mubr.f32.gmra.mrb[0].mxu0 %v96
  %v237 = vpop.f32.mrb[0].mxu0
  %v238 = vadd.f32 %v50, %v237
  %v239 = vpop.f32.mrb[0].mxu0
  %240 = vmatprep.mubr.f32.mxu0 0.0
  %241 = vmatmul.mubr.f32.gmra.mrb[0].mxu0 %v99
  %v242 = vpop.f32.mrb[0].mxu0
  %v243 = vadd.f32 %v50, %v242
  %v244 = vpop.f32.mrb[0].mxu0
  %245 = vdwg.mxu0
  %v246 = vld [vmem:[%s3] sm:$0xff]
  %v247 = vld [vmem:[%s3 + $0x10] sm:$0xff]
  %v248 = vld [vmem:[%s3 + $0x20] sm:$0xff]
  %v249 = vld [vmem:[%s3 + $0x30] sm:$0xff]
  %250 = vrot.lane.b32.xlu0 %v50, 96
  %v251 = vpop.permute.xlu0 %250
  %vm253 = vcmask 261120
  %v255 = vsel %vm253, %v168, 0
  %v258 = vsel %vm253, %v173, 0
  %v261 = vsel %vm253, %v178, 0
  %v264 = vsel %vm253, %v183, 0
  %v267 = vsel %vm253, %v188, 0
  %v270 = vsel %vm253, %v193, 0
  %v273 = vsel %vm253, %v198, 0
  %v276 = vsel %vm253, %v203, 0
  %v279 = vsel %vm253, %v208, 0
  %v282 = vsel %vm253, %v213, 0
  %v285 = vsel %vm253, %v218, 0
  %v288 = vsel %vm253, %v223, 0
  %v291 = vsel %vm253, %v228, 0
  %v294 = vsel %vm253, %v233, 0
  %v297 = vsel %vm253, %v238, 0
  %v300 = vsel %vm253, %v243, 0
  %302 = vmatprep.subr.mxu0 0.0
  %303 = vmatpush1.msra.mxu0 %v246
  %304 = vmatprep.subr.mxu0 0.0
  %305 = vmatpush1.msra.mxu0 %v247
  %306 = vmatprep.subr.mxu0 0.0
  %307 = vmatpush1.msra.mxu0 %v248
  %308 = vmatprep.subr.mxu0 0.0
  %309 = vmatpush1.msra.mxu0 %v249
  %310 = vmatprep.subr.mxu0 0.0
  %311 = vmatpush1.msra.mxu0 0.0
  %312 = vmatprep.subr.mxu0 0.0
  %313 = vmatpush1.msra.mxu0 0.0
  %314 = vmatprep.subr.mxu0 0.0
  %315 = vmatpush1.msra.mxu0 0.0
  %316 = vmatprep.subr.mxu0 0.0
  %317 = vmatpush1.msra.mxu0 0.0
  %318 = vmatprep.subr.mxu0 0.0
  %319 = vmatpush1.msra.mxu0 0.0
  %320 = vmatprep.subr.mxu0 0.0
  %321 = vmatpush1.msra.mxu0 0.0
  %322 = vmatprep.subr.mxu0 0.0
  %323 = vmatpush1.msra.mxu0 0.0
  %324 = vmatprep.subr.mxu0 0.0
  %325 = vmatpush1.msra.mxu0 0.0
  %326 = vmatprep.subr.mxu0 0.0
  %327 = vmatpush1.msra.mxu0 0.0
  %328 = vmatprep.subr.mxu0 0.0
  %329 = vmatpush1.msra.mxu0 0.0
  %330 = vmatprep.subr.mxu0 0.0
  %331 = vmatpush1.msra.mxu0 0.0
  %332 = vmatprep.subr.mxu0 0.0
  %333 = vmatpush1.msra.mxu0 0.0
  %334 = vmatprep.subr.mxu0 0.0
  %335 = vmatpush1.msra.mxu0 0.0
  %336 = vmatprep.subr.mxu0 0.0
  %337 = vmatpush1.msra.mxu0 0.0
  %338 = vmatprep.subr.mxu0 0.0
  %339 = vmatpush1.msra.mxu0 0.0
  %340 = vmatprep.subr.mxu0 0.0
  %341 = vmatpush1.msra.mxu0 0.0
  %342 = vmatprep.subr.mxu0 0.0
  %343 = vmatpush1.msra.mxu0 0.0
  %344 = vmatprep.subr.mxu0 0.0
  %345 = vmatpush1.msra.mxu0 0.0
  %346 = vmatprep.subr.mxu0 0.0
  %347 = vmatpush1.msra.mxu0 0.0
  %348 = vmatprep.subr.mxu0 0.0
  %349 = vmatpush1.msra.mxu0 0.0
  %350 = vmatprep.subr.mxu0 0.0
  %351 = vmatpush1.msra.mxu0 0.0
  %352 = vmatprep.subr.mxu0 0.0
  %353 = vmatpush1.msra.mxu0 0.0
  %354 = vmatprep.subr.mxu0 0.0
  %355 = vmatpush1.msra.mxu0 0.0
  %356 = vmatprep.subr.mxu0 0.0
  %357 = vmatpush1.msra.mxu0 0.0
  %358 = vmatprep.subr.mxu0 0.0
  %359 = vmatpush1.msra.mxu0 0.0
  %360 = vmatprep.subr.mxu0 0.0
  %361 = vmatpush1.msra.mxu0 0.0
  %362 = vmatprep.subr.mxu0 0.0
  %363 = vmatpush1.msra.mxu0 0.0
  %364 = vmatprep.subr.mxu0 0.0
  %365 = vmatpush1.msra.mxu0 0.0
  %366 = vmatprep.mubr.f32.mxu0 0.0
  %367 = vmatmul.mubr.f32.gmra.mrb[0].mxu0 %v255
  %v368 = vpop.f32.mrb[0].mxu0
  %v369 = vadd.f32 %v251, %v368
  %v370 = vpop.f32.mrb[0].mxu0
  %371 = vmatprep.mubr.f32.mxu0 0.0
  %372 = vmatmul.mubr.f32.gmra.mrb[0].mxu0 %v258
  %v373 = vpop.f32.mrb[0].mxu0
  %v374 = vadd.f32 %v251, %v373
  %v375 = vpop.f32.mrb[0].mxu0
  %376 = vmatprep.mubr.f32.mxu0 0.0
  %377 = vmatmul.mubr.f32.gmra.mrb[0].mxu0 %v261
  %v378 = vpop.f32.mrb[0].mxu0
  %v379 = vadd.f32 %v251, %v378
  %v380 = vpop.f32.mrb[0].mxu0
  %381 = vmatprep.mubr.f32.mxu0 0.0
  %382 = vmatmul.mubr.f32.gmra.mrb[0].mxu0 %v264
  %v383 = vpop.f32.mrb[0].mxu0
  %v384 = vadd.f32 %v251, %v383
  %v385 = vpop.f32.mrb[0].mxu0
  %386 = vmatprep.mubr.f32.mxu0 0.0
  %387 = vmatmul.mubr.f32.gmra.mrb[0].mxu0 %v267
  %v388 = vpop.f32.mrb[0].mxu0
  %v389 = vadd.f32 %v251, %v388
  %v390 = vpop.f32.mrb[0].mxu0
  %391 = vmatprep.mubr.f32.mxu0 0.0
  %392 = vmatmul.mubr.f32.gmra.mrb[0].mxu0 %v270
  %v393 = vpop.f32.mrb[0].mxu0
  %v394 = vadd.f32 %v251, %v393
  %v395 = vpop.f32.mrb[0].mxu0
  %396 = vmatprep.mubr.f32.mxu0 0.0
  %397 = vmatmul.mubr.f32.gmra.mrb[0].mxu0 %v273
  %v398 = vpop.f32.mrb[0].mxu0
  %v399 = vadd.f32 %v251, %v398
  %v400 = vpop.f32.mrb[0].mxu0
  %401 = vmatprep.mubr.f32.mxu0 0.0
  %402 = vmatmul.mubr.f32.gmra.mrb[0].mxu0 %v276
  %v403 = vpop.f32.mrb[0].mxu0
  %v404 = vadd.f32 %v251, %v403
  %v405 = vpop.f32.mrb[0].mxu0
  %406 = vmatprep.mubr.f32.mxu0 0.0
  %407 = vmatmul.mubr.f32.gmra.mrb[0].mxu0 %v279
  %v408 = vpop.f32.mrb[0].mxu0
  %v409 = vadd.f32 %v251, %v408
  %v410 = vpop.f32.mrb[0].mxu0
  %411 = vmatprep.mubr.f32.mxu0 0.0
  %412 = vmatmul.mubr.f32.gmra.mrb[0].mxu0 %v282
  %v413 = vpop.f32.mrb[0].mxu0
  %v414 = vadd.f32 %v251, %v413
  %v415 = vpop.f32.mrb[0].mxu0
  %416 = vmatprep.mubr.f32.mxu0 0.0
  %417 = vmatmul.mubr.f32.gmra.mrb[0].mxu0 %v285
  %v418 = vpop.f32.mrb[0].mxu0
  %v419 = vadd.f32 %v251, %v418
  %v420 = vpop.f32.mrb[0].mxu0
  %421 = vmatprep.mubr.f32.mxu0 0.0
  %422 = vmatmul.mubr.f32.gmra.mrb[0].mxu0 %v288
  %v423 = vpop.f32.mrb[0].mxu0
  %v424 = vadd.f32 %v251, %v423
  %v425 = vpop.f32.mrb[0].mxu0
  %426 = vmatprep.mubr.f32.mxu0 0.0
  %427 = vmatmul.mubr.f32.gmra.mrb[0].mxu0 %v291
  %v428 = vpop.f32.mrb[0].mxu0
  %v429 = vadd.f32 %v251, %v428
  %v430 = vpop.f32.mrb[0].mxu0
  %431 = vmatprep.mubr.f32.mxu0 0.0
  %432 = vmatmul.mubr.f32.gmra.mrb[0].mxu0 %v294
  %v433 = vpop.f32.mrb[0].mxu0
  %v434 = vadd.f32 %v251, %v433
  %v435 = vpop.f32.mrb[0].mxu0
  %436 = vmatprep.mubr.f32.mxu0 0.0
  %437 = vmatmul.mubr.f32.gmra.mrb[0].mxu0 %v297
  %v438 = vpop.f32.mrb[0].mxu0
  %v439 = vadd.f32 %v251, %v438
  %v440 = vpop.f32.mrb[0].mxu0
  %441 = vmatprep.mubr.f32.mxu0 0.0
  %442 = vmatmul.mubr.f32.gmra.mrb[0].mxu0 %v300
  %v443 = vpop.f32.mrb[0].mxu0
  %v444 = vadd.f32 %v251, %v443
  %v445 = vpop.f32.mrb[0].mxu0
  %446 = vdwg.mxu0
  %v447 = vmax.f32 %v369, 0.0
  %v448 = vmax.f32 %v374, 0.0
  %v449 = vmax.f32 %v379, 0.0
  %v450 = vmax.f32 %v384, 0.0
  %v451 = vmax.f32 %v389, 0.0
  %v452 = vmax.f32 %v394, 0.0
  %v453 = vmax.f32 %v399, 0.0
  %v454 = vmax.f32 %v404, 0.0
  %v455 = vmax.f32 %v409, 0.0
  %v456 = vmax.f32 %v414, 0.0
  %v457 = vmax.f32 %v419, 0.0
  %v458 = vmax.f32 %v424, 0.0
  %v459 = vmax.f32 %v429, 0.0
  %v460 = vmax.f32 %v434, 0.0
  %v461 = vmax.f32 %v439, 0.0
  %v462 = vmax.f32 %v444, 0.0
  %467 = vrot.lane.b32.xlu0 %v246, 96
  %v468 = vpop.permute.xlu0 %467
  %469 = vrot.lane.b32.xlu0 %v247, 96
  %v470 = vpop.permute.xlu0 %469
  %471 = vrot.lane.b32.xlu0 %v248, 96
  %v472 = vpop.permute.xlu0 %471
  %473 = vrot.lane.b32.xlu0 %v249, 96
  %v474 = vpop.permute.xlu0 %473
  %479 = vrot.lane.b32.xlu0 %v50, 64
  %v480 = vpop.permute.xlu0 %479
  %v483 = vsel %vm253, %v447, 0
  %v486 = vsel %vm253, %v448, 0
  %v489 = vsel %vm253, %v449, 0
  %v492 = vsel %vm253, %v450, 0
  %v495 = vsel %vm253, %v451, 0
  %v498 = vsel %vm253, %v452, 0
  %v501 = vsel %vm253, %v453, 0
  %v504 = vsel %vm253, %v454, 0
  %v507 = vsel %vm253, %v455, 0
  %v510 = vsel %vm253, %v456, 0
  %v513 = vsel %vm253, %v457, 0
  %v516 = vsel %vm253, %v458, 0
  %v519 = vsel %vm253, %v459, 0
  %v522 = vsel %vm253, %v460, 0
  %v525 = vsel %vm253, %v461, 0
  %v528 = vsel %vm253, %v462, 0
  %530 = vmatprep.subr.mxu0 0.0
  %531 = vmatpush1.msra.mxu0 %v468
  %532 = vmatprep.subr.mxu0 0.0
  %533 = vmatpush1.msra.mxu0 %v470
  %534 = vmatprep.subr.mxu0 0.0
  %535 = vmatpush1.msra.mxu0 %v472
  %536 = vmatprep.subr.mxu0 0.0
  %537 = vmatpush1.msra.mxu0 %v474
  %538 = vmatprep.subr.mxu0 0.0
  %539 = vmatpush1.msra.mxu0 0.0
  %540 = vmatprep.subr.mxu0 0.0
  %541 = vmatpush1.msra.mxu0 0.0
  %542 = vmatprep.subr.mxu0 0.0
  %543 = vmatpush1.msra.mxu0 0.0
  %544 = vmatprep.subr.mxu0 0.0
  %545 = vmatpush1.msra.mxu0 0.0
  %546 = vmatprep.subr.mxu0 0.0
  %547 = vmatpush1.msra.mxu0 0.0
  %548 = vmatprep.subr.mxu0 0.0
  %549 = vmatpush1.msra.mxu0 0.0
  %550 = vmatprep.subr.mxu0 0.0
  %551 = vmatpush1.msra.mxu0 0.0
  %552 = vmatprep.subr.mxu0 0.0
  %553 = vmatpush1.msra.mxu0 0.0
  %554 = vmatprep.subr.mxu0 0.0
  %555 = vmatpush1.msra.mxu0 0.0
  %556 = vmatprep.subr.mxu0 0.0
  %557 = vmatpush1.msra.mxu0 0.0
  %558 = vmatprep.subr.mxu0 0.0
  %559 = vmatpush1.msra.mxu0 0.0
  %560 = vmatprep.subr.mxu0 0.0
  %561 = vmatpush1.msra.mxu0 0.0
  %562 = vmatprep.subr.mxu0 0.0
  %563 = vmatpush1.msra.mxu0 0.0
  %564 = vmatprep.subr.mxu0 0.0
  %565 = vmatpush1.msra.mxu0 0.0
  %566 = vmatprep.subr.mxu0 0.0
  %567 = vmatpush1.msra.mxu0 0.0
  %568 = vmatprep.subr.mxu0 0.0
  %569 = vmatpush1.msra.mxu0 0.0
  %570 = vmatprep.subr.mxu0 0.0
  %571 = vmatpush1.msra.mxu0 0.0
  %572 = vmatprep.subr.mxu0 0.0
  %573 = vmatpush1.msra.mxu0 0.0
  %574 = vmatprep.subr.mxu0 0.0
  %575 = vmatpush1.msra.mxu0 0.0
  %576 = vmatprep.subr.mxu0 0.0
  %577 = vmatpush1.msra.mxu0 0.0
  %578 = vmatprep.subr.mxu0 0.0
  %579 = vmatpush1.msra.mxu0 0.0
  %580 = vmatprep.subr.mxu0 0.0
  %581 = vmatpush1.msra.mxu0 0.0
  %582 = vmatprep.subr.mxu0 0.0
  %583 = vmatpush1.msra.mxu0 0.0
  %584 = vmatprep.subr.mxu0 0.0
  %585 = vmatpush1.msra.mxu0 0.0
  %586 = vmatprep.subr.mxu0 0.0
  %587 = vmatpush1.msra.mxu0 0.0
  %588 = vmatprep.subr.mxu0 0.0
  %589 = vmatpush1.msra.mxu0 0.0
  %590 = vmatprep.subr.mxu0 0.0
  %591 = vmatpush1.msra.mxu0 0.0
  %592 = vmatprep.subr.mxu0 0.0
  %593 = vmatpush1.msra.mxu0 0.0
  %594 = vmatprep.mubr.f32.mxu0 0.0
  %595 = vmatmul.mubr.f32.gmra.mrb[0].mxu0 %v483
  %v596 = vpop.f32.mrb[0].mxu0
  %v597 = vadd.f32 %v480, %v596
  %v598 = vpop.f32.mrb[0].mxu0
  %599 = vmatprep.mubr.f32.mxu0 0.0
  %600 = vmatmul.mubr.f32.gmra.mrb[0].mxu0 %v486
  %v601 = vpop.f32.mrb[0].mxu0
  %v602 = vadd.f32 %v480, %v601
  %v603 = vpop.f32.mrb[0].mxu0
  %604 = vmatprep.mubr.f32.mxu0 0.0
  %605 = vmatmul.mubr.f32.gmra.mrb[0].mxu0 %v489
  %v606 = vpop.f32.mrb[0].mxu0
  %v607 = vadd.f32 %v480, %v606
  %v608 = vpop.f32.mrb[0].mxu0
  %609 = vmatprep.mubr.f32.mxu0 0.0
  %610 = vmatmul.mubr.f32.gmra.mrb[0].mxu0 %v492
  %v611 = vpop.f32.mrb[0].mxu0
  %v612 = vadd.f32 %v480, %v611
  %v613 = vpop.f32.mrb[0].mxu0
  %614 = vmatprep.mubr.f32.mxu0 0.0
  %615 = vmatmul.mubr.f32.gmra.mrb[0].mxu0 %v495
  %v616 = vpop.f32.mrb[0].mxu0
  %v617 = vadd.f32 %v480, %v616
  %v618 = vpop.f32.mrb[0].mxu0
  %619 = vmatprep.mubr.f32.mxu0 0.0
  %620 = vmatmul.mubr.f32.gmra.mrb[0].mxu0 %v498
  %v621 = vpop.f32.mrb[0].mxu0
  %v622 = vadd.f32 %v480, %v621
  %v623 = vpop.f32.mrb[0].mxu0
  %624 = vmatprep.mubr.f32.mxu0 0.0
  %625 = vmatmul.mubr.f32.gmra.mrb[0].mxu0 %v501
  %v626 = vpop.f32.mrb[0].mxu0
  %v627 = vadd.f32 %v480, %v626
  %v628 = vpop.f32.mrb[0].mxu0
  %629 = vmatprep.mubr.f32.mxu0 0.0
  %630 = vmatmul.mubr.f32.gmra.mrb[0].mxu0 %v504
  %v631 = vpop.f32.mrb[0].mxu0
  %v632 = vadd.f32 %v480, %v631
  %v633 = vpop.f32.mrb[0].mxu0
  %634 = vmatprep.mubr.f32.mxu0 0.0
  %635 = vmatmul.mubr.f32.gmra.mrb[0].mxu0 %v507
  %v636 = vpop.f32.mrb[0].mxu0
  %v637 = vadd.f32 %v480, %v636
  %v638 = vpop.f32.mrb[0].mxu0
  %639 = vmatprep.mubr.f32.mxu0 0.0
  %640 = vmatmul.mubr.f32.gmra.mrb[0].mxu0 %v510
  %v641 = vpop.f32.mrb[0].mxu0
  %v642 = vadd.f32 %v480, %v641
  %v643 = vpop.f32.mrb[0].mxu0
  %644 = vmatprep.mubr.f32.mxu0 0.0
  %645 = vmatmul.mubr.f32.gmra.mrb[0].mxu0 %v513
  %v646 = vpop.f32.mrb[0].mxu0
  %v647 = vadd.f32 %v480, %v646
  %v648 = vpop.f32.mrb[0].mxu0
  %649 = vmatprep.mubr.f32.mxu0 0.0
  %650 = vmatmul.mubr.f32.gmra.mrb[0].mxu0 %v516
  %v651 = vpop.f32.mrb[0].mxu0
  %v652 = vadd.f32 %v480, %v651
  %v653 = vpop.f32.mrb[0].mxu0
  %654 = vmatprep.mubr.f32.mxu0 0.0
  %655 = vmatmul.mubr.f32.gmra.mrb[0].mxu0 %v519
  %v656 = vpop.f32.mrb[0].mxu0
  %v657 = vadd.f32 %v480, %v656
  %v658 = vpop.f32.mrb[0].mxu0
  %659 = vmatprep.mubr.f32.mxu0 0.0
  %660 = vmatmul.mubr.f32.gmra.mrb[0].mxu0 %v522
  %v661 = vpop.f32.mrb[0].mxu0
  %v662 = vadd.f32 %v480, %v661
  %v663 = vpop.f32.mrb[0].mxu0
  %664 = vmatprep.mubr.f32.mxu0 0.0
  %665 = vmatmul.mubr.f32.gmra.mrb[0].mxu0 %v525
  %v666 = vpop.f32.mrb[0].mxu0
  %v667 = vadd.f32 %v480, %v666
  %v668 = vpop.f32.mrb[0].mxu0
  %669 = vmatprep.mubr.f32.mxu0 0.0
  %670 = vmatmul.mubr.f32.gmra.mrb[0].mxu0 %v528
  %v671 = vpop.f32.mrb[0].mxu0
  %v672 = vadd.f32 %v480, %v671
  %v673 = vpop.f32.mrb[0].mxu0
  %674 = vdwg.mxu0
  %v675 = vmax.f32 %v597, 0.0
  %v676 = vmax.f32 %v602, 0.0
  %v677 = vmax.f32 %v607, 0.0
  %v678 = vmax.f32 %v612, 0.0
  %v679 = vmax.f32 %v617, 0.0
  %v680 = vmax.f32 %v622, 0.0
  %v681 = vmax.f32 %v627, 0.0
  %v682 = vmax.f32 %v632, 0.0
  %v683 = vmax.f32 %v637, 0.0
  %v684 = vmax.f32 %v642, 0.0
  %v685 = vmax.f32 %v647, 0.0
  %v686 = vmax.f32 %v652, 0.0
  %v687 = vmax.f32 %v657, 0.0
  %v688 = vmax.f32 %v662, 0.0
  %v689 = vmax.f32 %v667, 0.0
  %v690 = vmax.f32 %v672, 0.0
  %v691 = vld [vmem:[%s1] sm:$0x3]
  %698 = vrot.lane.b32.xlu0 %v39, 96
  %v699 = vpop.permute.xlu0 %698
  %700 = vrot.lane.b32.xlu0 %v40, 96
  %v701 = vpop.permute.xlu0 %700
  %702 = vrot.lane.b32.xlu0 %v41, 96
  %v703 = vpop.permute.xlu0 %702
  %704 = vrot.lane.b32.xlu0 %v42, 96
  %v705 = vpop.permute.xlu0 %704
  %706 = vrot.lane.b32.xlu0 %v43, 96
  %v707 = vpop.permute.xlu0 %706
  %708 = vrot.lane.b32.xlu0 %v44, 96
  %v709 = vpop.permute.xlu0 %708
  %716 = vrot.lane.b32.xlu0 %v50, 32
  %v717 = vpop.permute.xlu0 %716
  %v720 = vsel %vm52, %v691, 0
  %722 = vmatprep.subr.mxu0 0.0
  %723 = vmatpush1.msra.mxu0 %v699
  %724 = vmatprep.subr.mxu0 0.0
  %725 = vmatpush1.msra.mxu0 %v701
  %726 = vmatprep.subr.mxu0 0.0
  %727 = vmatpush1.msra.mxu0 %v703
  %728 = vmatprep.subr.mxu0 0.0
  %729 = vmatpush1.msra.mxu0 %v705
  %730 = vmatprep.subr.mxu0 0.0
  %731 = vmatpush1.msra.mxu0 %v707
  %732 = vmatprep.subr.mxu0 0.0
  %733 = vmatpush1.msra.mxu0 %v709
  %734 = vmatprep.subr.mxu0 0.0
  %735 = vmatpush1.msra.mxu0 0.0
  %736 = vmatprep.subr.mxu0 0.0
  %737 = vmatpush1.msra.mxu0 0.0
  %738 = vmatprep.subr.mxu0 0.0
  %739 = vmatpush1.msra.mxu0 0.0
  %740 = vmatprep.subr.mxu0 0.0
  %741 = vmatpush1.msra.mxu0 0.0
  %742 = vmatprep.subr.mxu0 0.0
  %743 = vmatpush1.msra.mxu0 0.0
  %744 = vmatprep.subr.mxu0 0.0
  %745 = vmatpush1.msra.mxu0 0.0
  %746 = vmatprep.subr.mxu0 0.0
  %747 = vmatpush1.msra.mxu0 0.0
  %748 = vmatprep.subr.mxu0 0.0
  %749 = vmatpush1.msra.mxu0 0.0
  %750 = vmatprep.subr.mxu0 0.0
  %751 = vmatpush1.msra.mxu0 0.0
  %752 = vmatprep.subr.mxu0 0.0
  %753 = vmatpush1.msra.mxu0 0.0
  %754 = vmatprep.subr.mxu0 0.0
  %755 = vmatpush1.msra.mxu0 0.0
  %756 = vmatprep.subr.mxu0 0.0
  %757 = vmatpush1.msra.mxu0 0.0
  %758 = vmatprep.subr.mxu0 0.0
  %759 = vmatpush1.msra.mxu0 0.0
  %760 = vmatprep.subr.mxu0 0.0
  %761 = vmatpush1.msra.mxu0 0.0
  %762 = vmatprep.subr.mxu0 0.0
  %763 = vmatpush1.msra.mxu0 0.0
  %764 = vmatprep.subr.mxu0 0.0
  %765 = vmatpush1.msra.mxu0 0.0
  %766 = vmatprep.subr.mxu0 0.0
  %767 = vmatpush1.msra.mxu0 0.0
  %768 = vmatprep.subr.mxu0 0.0
  %769 = vmatpush1.msra.mxu0 0.0
  %770 = vmatprep.subr.mxu0 0.0
  %771 = vmatpush1.msra.mxu0 0.0
  %772 = vmatprep.subr.mxu0 0.0
  %773 = vmatpush1.msra.mxu0 0.0
  %774 = vmatprep.subr.mxu0 0.0
  %775 = vmatpush1.msra.mxu0 0.0
  %776 = vmatprep.subr.mxu0 0.0
  %777 = vmatpush1.msra.mxu0 0.0
  %778 = vmatprep.subr.mxu0 0.0
  %779 = vmatpush1.msra.mxu0 0.0
  %780 = vmatprep.subr.mxu0 0.0
  %781 = vmatpush1.msra.mxu0 0.0
  %782 = vmatprep.subr.mxu0 0.0
  %783 = vmatpush1.msra.mxu0 0.0
  %784 = vmatprep.subr.mxu0 0.0
  %785 = vmatpush1.msra.mxu0 0.0
  %786 = vmatprep.mubr.f32.mxu0 0.0
  %787 = vmatmul.mubr.f32.gmra.mrb[0].mxu0 %v720
  %v788 = vpop.f32.mrb[0].mxu0
  %v789 = vadd.f32 %v717, %v788
  %v790 = vpop.f32.mrb[0].mxu0
  %791 = vdwg.mxu0
  %v792 = vld [vmem:[%s4 + $0x2] sm:$0x1]
  %v794 = vlaneseq
  %v795 = vshrl.u32 %v794, 7
  %v796 = vsub.s32 0, %v795
  %v797 = vrot.slane %v792, %v796
  %799 = vrot.lane.b32.xlu0 %v246, 64
  %v800 = vpop.permute.xlu0 %799
  %801 = vrot.lane.b32.xlu0 %v247, 64
  %v802 = vpop.permute.xlu0 %801
  %803 = vrot.lane.b32.xlu0 %v248, 64
  %v804 = vpop.permute.xlu0 %803
  %805 = vrot.lane.b32.xlu0 %v249, 64
  %v806 = vpop.permute.xlu0 %805
  %v812 = vsel %vm253, %v675, 0
  %v815 = vsel %vm253, %v676, 0
  %v818 = vsel %vm253, %v677, 0
  %v821 = vsel %vm253, %v678, 0
  %v824 = vsel %vm253, %v679, 0
  %v827 = vsel %vm253, %v680, 0
  %v830 = vsel %vm253, %v681, 0
  %v833 = vsel %vm253, %v682, 0
  %v836 = vsel %vm253, %v683, 0
  %v839 = vsel %vm253, %v684, 0
  %v842 = vsel %vm253, %v685, 0
  %v845 = vsel %vm253, %v686, 0
  %v848 = vsel %vm253, %v687, 0
  %v851 = vsel %vm253, %v688, 0
  %v854 = vsel %vm253, %v689, 0
  %v857 = vsel %vm253, %v690, 0
  %859 = vmatprep.subr.mxu0 0.0
  %860 = vmatpush1.msra.mxu0 %v800
  %861 = vmatprep.subr.mxu0 0.0
  %862 = vmatpush1.msra.mxu0 %v802
  %863 = vmatprep.subr.mxu0 0.0
  %864 = vmatpush1.msra.mxu0 %v804
  %865 = vmatprep.subr.mxu0 0.0
  %866 = vmatpush1.msra.mxu0 %v806
  %867 = vmatprep.subr.mxu0 0.0
  %868 = vmatpush1.msra.mxu0 0.0
  %869 = vmatprep.subr.mxu0 0.0
  %870 = vmatpush1.msra.mxu0 0.0
  %871 = vmatprep.subr.mxu0 0.0
  %872 = vmatpush1.msra.mxu0 0.0
  %873 = vmatprep.subr.mxu0 0.0
  %874 = vmatpush1.msra.mxu0 0.0
  %875 = vmatprep.subr.mxu0 0.0
  %876 = vmatpush1.msra.mxu0 0.0
  %877 = vmatprep.subr.mxu0 0.0
  %878 = vmatpush1.msra.mxu0 0.0
  %879 = vmatprep.subr.mxu0 0.0
  %880 = vmatpush1.msra.mxu0 0.0
  %881 = vmatprep.subr.mxu0 0.0
  %882 = vmatpush1.msra.mxu0 0.0
  %883 = vmatprep.subr.mxu0 0.0
  %884 = vmatpush1.msra.mxu0 0.0
  %885 = vmatprep.subr.mxu0 0.0
  %886 = vmatpush1.msra.mxu0 0.0
  %887 = vmatprep.subr.mxu0 0.0
  %888 = vmatpush1.msra.mxu0 0.0
  %889 = vmatprep.subr.mxu0 0.0
  %890 = vmatpush1.msra.mxu0 0.0
  %891 = vmatprep.subr.mxu0 0.0
  %892 = vmatpush1.msra.mxu0 0.0
  %893 = vmatprep.subr.mxu0 0.0
  %894 = vmatpush1.msra.mxu0 0.0
  %895 = vmatprep.subr.mxu0 0.0
  %896 = vmatpush1.msra.mxu0 0.0
  %897 = vmatprep.subr.mxu0 0.0
  %898 = vmatpush1.msra.mxu0 0.0
  %899 = vmatprep.subr.mxu0 0.0
  %900 = vmatpush1.msra.mxu0 0.0
  %901 = vmatprep.subr.mxu0 0.0
  %902 = vmatpush1.msra.mxu0 0.0
  %903 = vmatprep.subr.mxu0 0.0
  %904 = vmatpush1.msra.mxu0 0.0
  %905 = vmatprep.subr.mxu0 0.0
  %906 = vmatpush1.msra.mxu0 0.0
  %907 = vmatprep.subr.mxu0 0.0
  %908 = vmatpush1.msra.mxu0 0.0
  %909 = vmatprep.subr.mxu0 0.0
  %910 = vmatpush1.msra.mxu0 0.0
  %911 = vmatprep.subr.mxu0 0.0
  %912 = vmatpush1.msra.mxu0 0.0
  %913 = vmatprep.subr.mxu0 0.0
  %914 = vmatpush1.msra.mxu0 0.0
  %915 = vmatprep.subr.mxu0 0.0
  %916 = vmatpush1.msra.mxu0 0.0
  %917 = vmatprep.subr.mxu0 0.0
  %918 = vmatpush1.msra.mxu0 0.0
  %919 = vmatprep.subr.mxu0 0.0
  %920 = vmatpush1.msra.mxu0 0.0
  %921 = vmatprep.subr.mxu0 0.0
  %922 = vmatpush1.msra.mxu0 0.0
  %923 = vmatprep.mubr.f32.mxu0 0.0
  %924 = vmatmul.mubr.f32.gmra.mrb[0].mxu0 %v812
  %v925 = vpop.f32.mrb[0].mxu0
  %v926 = vadd.f32 %v797, %v925
  %v927 = vpop.f32.mrb[0].mxu0
  %928 = vmatprep.mubr.f32.mxu0 0.0
  %929 = vmatmul.mubr.f32.gmra.mrb[0].mxu0 %v815
  %v930 = vpop.f32.mrb[0].mxu0
  %v931 = vadd.f32 %v797, %v930
  %v932 = vpop.f32.mrb[0].mxu0
  %933 = vmatprep.mubr.f32.mxu0 0.0
  %934 = vmatmul.mubr.f32.gmra.mrb[0].mxu0 %v818
  %v935 = vpop.f32.mrb[0].mxu0
  %v936 = vadd.f32 %v797, %v935
  %v937 = vpop.f32.mrb[0].mxu0
  %938 = vmatprep.mubr.f32.mxu0 0.0
  %939 = vmatmul.mubr.f32.gmra.mrb[0].mxu0 %v821
  %v940 = vpop.f32.mrb[0].mxu0
  %v941 = vadd.f32 %v797, %v940
  %v942 = vpop.f32.mrb[0].mxu0
  %943 = vmatprep.mubr.f32.mxu0 0.0
  %944 = vmatmul.mubr.f32.gmra.mrb[0].mxu0 %v824
  %v945 = vpop.f32.mrb[0].mxu0
  %v946 = vadd.f32 %v797, %v945
  %v947 = vpop.f32.mrb[0].mxu0
  %948 = vmatprep.mubr.f32.mxu0 0.0
  %949 = vmatmul.mubr.f32.gmra.mrb[0].mxu0 %v827
  %v950 = vpop.f32.mrb[0].mxu0
  %v951 = vadd.f32 %v797, %v950
  %v952 = vpop.f32.mrb[0].mxu0
  %953 = vmatprep.mubr.f32.mxu0 0.0
  %954 = vmatmul.mubr.f32.gmra.mrb[0].mxu0 %v830
  %v955 = vpop.f32.mrb[0].mxu0
  %v956 = vadd.f32 %v797, %v955
  %v957 = vpop.f32.mrb[0].mxu0
  %958 = vmatprep.mubr.f32.mxu0 0.0
  %959 = vmatmul.mubr.f32.gmra.mrb[0].mxu0 %v833
  %v960 = vpop.f32.mrb[0].mxu0
  %v961 = vadd.f32 %v797, %v960
  %v962 = vpop.f32.mrb[0].mxu0
  %963 = vmatprep.mubr.f32.mxu0 0.0
  %964 = vmatmul.mubr.f32.gmra.mrb[0].mxu0 %v836
  %v965 = vpop.f32.mrb[0].mxu0
  %v966 = vadd.f32 %v797, %v965
  %v967 = vpop.f32.mrb[0].mxu0
  %968 = vmatprep.mubr.f32.mxu0 0.0
  %969 = vmatmul.mubr.f32.gmra.mrb[0].mxu0 %v839
  %v970 = vpop.f32.mrb[0].mxu0
  %v971 = vadd.f32 %v797, %v970
  %v972 = vpop.f32.mrb[0].mxu0
  %973 = vmatprep.mubr.f32.mxu0 0.0
  %974 = vmatmul.mubr.f32.gmra.mrb[0].mxu0 %v842
  %v975 = vpop.f32.mrb[0].mxu0
  %v976 = vadd.f32 %v797, %v975
  %v977 = vpop.f32.mrb[0].mxu0
  %978 = vmatprep.mubr.f32.mxu0 0.0
  %979 = vmatmul.mubr.f32.gmra.mrb[0].mxu0 %v845
  %v980 = vpop.f32.mrb[0].mxu0
  %v981 = vadd.f32 %v797, %v980
  %v982 = vpop.f32.mrb[0].mxu0
  %983 = vmatprep.mubr.f32.mxu0 0.0
  %984 = vmatmul.mubr.f32.gmra.mrb[0].mxu0 %v848
  %v985 = vpop.f32.mrb[0].mxu0
  %v986 = vadd.f32 %v797, %v985
  %v987 = vpop.f32.mrb[0].mxu0
  %988 = vmatprep.mubr.f32.mxu0 0.0
  %989 = vmatmul.mubr.f32.gmra.mrb[0].mxu0 %v851
  %v990 = vpop.f32.mrb[0].mxu0
  %v991 = vadd.f32 %v797, %v990
  %v992 = vpop.f32.mrb[0].mxu0
  %993 = vmatprep.mubr.f32.mxu0 0.0
  %994 = vmatmul.mubr.f32.gmra.mrb[0].mxu0 %v854
  %v995 = vpop.f32.mrb[0].mxu0
  %v996 = vadd.f32 %v797, %v995
  %v997 = vpop.f32.mrb[0].mxu0
  %998 = vmatprep.mubr.f32.mxu0 0.0
  %999 = vmatmul.mubr.f32.gmra.mrb[0].mxu0 %v857
  %v1000 = vpop.f32.mrb[0].mxu0
  %v1001 = vadd.f32 %v797, %v1000
  %v1002 = vpop.f32.mrb[0].mxu0
  %1003 = vdwg.mxu0
  %v1004 = vld [vmem:[%s5] sm:$0x3]
  %v1006 = vsel %vm253, %v789, 0
  %v1009 = vsel %vm253, %v926, 0
  %v1012 = vsel %vm253, %v931, 0
  %v1015 = vsel %vm253, %v936, 0
  %v1018 = vsel %vm253, %v941, 0
  %v1021 = vsel %vm253, %v946, 0
  %v1024 = vsel %vm253, %v951, 0
  %v1027 = vsel %vm253, %v956, 0
  %v1030 = vsel %vm253, %v961, 0
  %v1033 = vsel %vm253, %v966, 0
  %v1036 = vsel %vm253, %v971, 0
  %v1039 = vsel %vm253, %v976, 0
  %v1042 = vsel %vm253, %v981, 0
  %v1045 = vsel %vm253, %v986, 0
  %v1048 = vsel %vm253, %v991, 0
  %v1051 = vsel %vm253, %v996, 0
  %v1054 = vsel %vm253, %v1001, 0
  %1056 = vmatprep.subr.mxu0 0.0
  %1057 = vmatpush1.xpose.msra.mxu0 %v1009
  %1058 = vmatprep.subr.mxu0 0.0
  %1059 = vmatpush1.xpose.msra.mxu0 %v1012
  %1060 = vmatprep.subr.mxu0 0.0
  %1061 = vmatpush1.xpose.msra.mxu0 %v1015
  %1062 = vmatprep.subr.mxu0 0.0
  %1063 = vmatpush1.xpose.msra.mxu0 %v1018
  %1064 = vmatprep.subr.mxu0 0.0
  %1065 = vmatpush1.xpose.msra.mxu0 %v1021
  %1066 = vmatprep.subr.mxu0 0.0
  %1067 = vmatpush1.xpose.msra.mxu0 %v1024
  %1068 = vmatprep.subr.mxu0 0.0
  %1069 = vmatpush1.xpose.msra.mxu0 %v1027
  %1070 = vmatprep.subr.mxu0 0.0
  %1071 = vmatpush1.xpose.msra.mxu0 %v1030
  %1072 = vmatprep.subr.mxu0 0.0
  %1073 = vmatpush1.xpose.msra.mxu0 %v1033
  %1074 = vmatprep.subr.mxu0 0.0
  %1075 = vmatpush1.xpose.msra.mxu0 %v1036
  %1076 = vmatprep.subr.mxu0 0.0
  %1077 = vmatpush1.xpose.msra.mxu0 %v1039
  %1078 = vmatprep.subr.mxu0 0.0
  %1079 = vmatpush1.xpose.msra.mxu0 %v1042
  %1080 = vmatprep.subr.mxu0 0.0
  %1081 = vmatpush1.xpose.msra.mxu0 %v1045
  %1082 = vmatprep.subr.mxu0 0.0
  %1083 = vmatpush1.xpose.msra.mxu0 %v1048
  %1084 = vmatprep.subr.mxu0 0.0
  %1085 = vmatpush1.xpose.msra.mxu0 %v1051
  %1086 = vmatprep.subr.mxu0 0.0
  %1087 = vmatpush1.xpose.msra.mxu0 %v1054
  %1088 = vmatprep.subr.mxu0 0.0
  %1089 = vmatpush1.xpose.msra.mxu0 0.0
  %1090 = vmatprep.subr.mxu0 0.0
  %1091 = vmatpush1.xpose.msra.mxu0 0.0
  %1092 = vmatprep.subr.mxu0 0.0
  %1093 = vmatpush1.xpose.msra.mxu0 0.0
  %1094 = vmatprep.subr.mxu0 0.0
  %1095 = vmatpush1.xpose.msra.mxu0 0.0
  %1096 = vmatprep.subr.mxu0 0.0
  %1097 = vmatpush1.xpose.msra.mxu0 0.0
  %1098 = vmatprep.subr.mxu0 0.0
  %1099 = vmatpush1.xpose.msra.mxu0 0.0
  %1100 = vmatprep.subr.mxu0 0.0
  %1101 = vmatpush1.xpose.msra.mxu0 0.0
  %1102 = vmatprep.subr.mxu0 0.0
  %1103 = vmatpush1.xpose.msra.mxu0 0.0
  %1104 = vmatprep.subr.mxu0 0.0
  %1105 = vmatpush1.xpose.msra.mxu0 0.0
  %1106 = vmatprep.subr.mxu0 0.0
  %1107 = vmatpush1.xpose.msra.mxu0 0.0
  %1108 = vmatprep.subr.mxu0 0.0
  %1109 = vmatpush1.xpose.msra.mxu0 0.0
  %1110 = vmatprep.subr.mxu0 0.0
  %1111 = vmatpush1.xpose.msra.mxu0 0.0
  %1112 = vmatprep.subr.mxu0 0.0
  %1113 = vmatpush1.xpose.msra.mxu0 0.0
  %1114 = vmatprep.subr.mxu0 0.0
  %1115 = vmatpush1.xpose.msra.mxu0 0.0
  %1116 = vmatprep.subr.mxu0 0.0
  %1117 = vmatpush1.xpose.msra.mxu0 0.0
  %1118 = vmatprep.subr.mxu0 0.0
  %1119 = vmatpush1.xpose.msra.mxu0 0.0
  %1120 = vmatprep.mubr.f32.mxu0 0.0
  %1121 = vmatmul.mubr.f32.gmra.mrb[0].mxu0 %v1006
  %v1122 = vpop.f32.mrb[0].mxu0
  %v1123 = vadd.f32 %v1004, %v1122
  %v1124 = vpop.f32.mrb[0].mxu0
  %1125 = vdwg.mxu0
  %vm1126 = vcmask 1041408
  %v1127 = vsel %vm1126, %v1123, -inf
  %1128 = vmax.xlane.f32.xlu0 %v1127
  %v1129 = vpop.xlane.xlu0 %1128
  %v1130 = vsub.f32 %v1123, %v1129
  %v1131 = vmul.f32 %v1130, 1.442695
  %v1132 = vpow.pop %v1131
  %v1133 = vsel %vm1126, %v1132, 0.0
  %1134 = vadd.xlane.f32.xlu0 %v1133
  %v1135 = vpop.xlane.xlu0 %1134
  %v1136 = vrcp.pop %v1135
  %v1137 = vmul.f32 %v1132, %v1136
  %1138 = vrot.lane.b32.xlu0 %v926, 96
  %v1139 = vpop.permute.xlu0 %1138
  %1140 = vrot.lane.b32.xlu0 %v931, 96
  %v1141 = vpop.permute.xlu0 %1140
  %1142 = vrot.lane.b32.xlu0 %v936, 96
  %v1143 = vpop.permute.xlu0 %1142
  %1144 = vrot.lane.b32.xlu0 %v941, 96
  %v1145 = vpop.permute.xlu0 %1144
  %1146 = vrot.lane.b32.xlu0 %v946, 96
  %v1147 = vpop.permute.xlu0 %1146
  %1148 = vrot.lane.b32.xlu0 %v951, 96
  %v1149 = vpop.permute.xlu0 %1148
  %1150 = vrot.lane.b32.xlu0 %v956, 96
  %v1151 = vpop.permute.xlu0 %1150
  %1152 = vrot.lane.b32.xlu0 %v961, 96
  %v1153 = vpop.permute.xlu0 %1152
  %1154 = vrot.lane.b32.xlu0 %v966, 96
  %v1155 = vpop.permute.xlu0 %1154
  %1156 = vrot.lane.b32.xlu0 %v971, 96
  %v1157 = vpop.permute.xlu0 %1156
  %1158 = vrot.lane.b32.xlu0 %v976, 96
  %v1159 = vpop.permute.xlu0 %1158
  %1160 = vrot.lane.b32.xlu0 %v981, 96
  %v1161 = vpop.permute.xlu0 %1160
  %1162 = vrot.lane.b32.xlu0 %v986, 96
  %v1163 = vpop.permute.xlu0 %1162
  %1164 = vrot.lane.b32.xlu0 %v991, 96
  %v1165 = vpop.permute.xlu0 %1164
  %1166 = vrot.lane.b32.xlu0 %v996, 96
  %v1167 = vpop.permute.xlu0 %1166
  %1168 = vrot.lane.b32.xlu0 %v1001, 96
  %v1169 = vpop.permute.xlu0 %1168
  %1186 = vmatprep.subr.mxu0 0.0
  %1187 = vmatpush1.msra.mxu0 %v1139
  %1188 = vmatprep.subr.mxu0 0.0
  %1189 = vmatpush1.msra.mxu0 %v1141
  %1190 = vmatprep.subr.mxu0 0.0
  %1191 = vmatpush1.msra.mxu0 %v1143
  %1192 = vmatprep.subr.mxu0 0.0
  %1193 = vmatpush1.msra.mxu0 %v1145
  %1194 = vmatprep.subr.mxu0 0.0
  %1195 = vmatpush1.msra.mxu0 %v1147
  %1196 = vmatprep.subr.mxu0 0.0
  %1197 = vmatpush1.msra.mxu0 %v1149
  %1198 = vmatprep.subr.mxu0 0.0
  %1199 = vmatpush1.msra.mxu0 %v1151
  %1200 = vmatprep.subr.mxu0 0.0
  %1201 = vmatpush1.msra.mxu0 %v1153
  %1202 = vmatprep.subr.mxu0 0.0
  %1203 = vmatpush1.msra.mxu0 %v1155
  %1204 = vmatprep.subr.mxu0 0.0
  %1205 = vmatpush1.msra.mxu0 %v1157
  %1206 = vmatprep.subr.mxu0 0.0
  %1207 = vmatpush1.msra.mxu0 %v1159
  %1208 = vmatprep.subr.mxu0 0.0
  %1209 = vmatpush1.msra.mxu0 %v1161
  %1210 = vmatprep.subr.mxu0 0.0
  %1211 = vmatpush1.msra.mxu0 %v1163
  %1212 = vmatprep.subr.mxu0 0.0
  %1213 = vmatpush1.msra.mxu0 %v1165
  %1214 = vmatprep.subr.mxu0 0.0
  %1215 = vmatpush1.msra.mxu0 %v1167
  %1216 = vmatprep.subr.mxu0 0.0
  %1217 = vmatpush1.msra.mxu0 %v1169
  %1218 = vmatprep.subr.mxu0 0.0
  %1219 = vmatpush1.msra.mxu0 0.0
  %1220 = vmatprep.subr.mxu0 0.0
  %1221 = vmatpush1.msra.mxu0 0.0
  %1222 = vmatprep.subr.mxu0 0.0
  %1223 = vmatpush1.msra.mxu0 0.0
  %1224 = vmatprep.subr.mxu0 0.0
  %1225 = vmatpush1.msra.mxu0 0.0
  %1226 = vmatprep.subr.mxu0 0.0
  %1227 = vmatpush1.msra.mxu0 0.0
  %1228 = vmatprep.subr.mxu0 0.0
  %1229 = vmatpush1.msra.mxu0 0.0
  %1230 = vmatprep.subr.mxu0 0.0
  %1231 = vmatpush1.msra.mxu0 0.0
  %1232 = vmatprep.subr.mxu0 0.0
  %1233 = vmatpush1.msra.mxu0 0.0
  %1234 = vmatprep.subr.mxu0 0.0
  %1235 = vmatpush1.msra.mxu0 0.0
  %1236 = vmatprep.subr.mxu0 0.0
  %1237 = vmatpush1.msra.mxu0 0.0
  %1238 = vmatprep.subr.mxu0 0.0
  %1239 = vmatpush1.msra.mxu0 0.0
  %1240 = vmatprep.subr.mxu0 0.0
  %1241 = vmatpush1.msra.mxu0 0.0
  %1242 = vmatprep.subr.mxu0 0.0
  %1243 = vmatpush1.msra.mxu0 0.0
  %1244 = vmatprep.subr.mxu0 0.0
  %1245 = vmatpush1.msra.mxu0 0.0
  %1246 = vmatprep.subr.mxu0 0.0
  %1247 = vmatpush1.msra.mxu0 0.0
  %1248 = vmatprep.subr.mxu0 0.0
  %1249 = vmatpush1.msra.mxu0 0.0
  %1250 = vmatprep.mubr.f32.mxu0 0.0
  %1251 = vmatmul.mubr.f32.gmra.mrb[0].mxu0 %v1137
  %v1252 = vpop.f32.mrb[0].mxu0
  %v1253 = vadd.f32 0.0, %v1252
  %v1254 = vpop.f32.mrb[0].mxu0
  %1255 = vdwg.mxu0
  %v1256 = vld [vmem:[%s3 + $0x8] sm:$0xff]
  %v1257 = vld [vmem:[%s3 + $0x18] sm:$0xff]
  %v1258 = vld [vmem:[%s3 + $0x28] sm:$0xff]
  %v1259 = vld [vmem:[%s3 + $0x38] sm:$0xff]
  %v1260 = vld [vmem:[%s4] sm:$0x1]
  %v1262 = vlaneseq
  %v1263 = vshrl.u32 %v1262, 7
  %v1264 = vsub.s32 0, %v1263
  %v1265 = vrot.slane %v1260, %v1264
  %v1268 = vsel %vm253, %v1253, 0
  %1270 = vmatprep.subr.mxu0 0.0
  %1271 = vmatpush1.msra.mxu0 %v1256
  %1272 = vmatprep.subr.mxu0 0.0
  %1273 = vmatpush1.msra.mxu0 %v1257
  %1274 = vmatprep.subr.mxu0 0.0
  %1275 = vmatpush1.msra.mxu0 %v1258
  %1276 = vmatprep.subr.mxu0 0.0
  %1277 = vmatpush1.msra.mxu0 %v1259
  %1278 = vmatprep.subr.mxu0 0.0
  %1279 = vmatpush1.msra.mxu0 0.0
  %1280 = vmatprep.subr.mxu0 0.0
  %1281 = vmatpush1.msra.mxu0 0.0
  %1282 = vmatprep.subr.mxu0 0.0
  %1283 = vmatpush1.msra.mxu0 0.0
  %1284 = vmatprep.subr.mxu0 0.0
  %1285 = vmatpush1.msra.mxu0 0.0
  %1286 = vmatprep.subr.mxu0 0.0
  %1287 = vmatpush1.msra.mxu0 0.0
  %1288 = vmatprep.subr.mxu0 0.0
  %1289 = vmatpush1.msra.mxu0 0.0
  %1290 = vmatprep.subr.mxu0 0.0
  %1291 = vmatpush1.msra.mxu0 0.0
  %1292 = vmatprep.subr.mxu0 0.0
  %1293 = vmatpush1.msra.mxu0 0.0
  %1294 = vmatprep.subr.mxu0 0.0
  %1295 = vmatpush1.msra.mxu0 0.0
  %1296 = vmatprep.subr.mxu0 0.0
  %1297 = vmatpush1.msra.mxu0 0.0
  %1298 = vmatprep.subr.mxu0 0.0
  %1299 = vmatpush1.msra.mxu0 0.0
  %1300 = vmatprep.subr.mxu0 0.0
  %1301 = vmatpush1.msra.mxu0 0.0
  %1302 = vmatprep.subr.mxu0 0.0
  %1303 = vmatpush1.msra.mxu0 0.0
  %1304 = vmatprep.subr.mxu0 0.0
  %1305 = vmatpush1.msra.mxu0 0.0
  %1306 = vmatprep.subr.mxu0 0.0
  %1307 = vmatpush1.msra.mxu0 0.0
  %1308 = vmatprep.subr.mxu0 0.0
  %1309 = vmatpush1.msra.mxu0 0.0
  %1310 = vmatprep.subr.mxu0 0.0
  %1311 = vmatpush1.msra.mxu0 0.0
  %1312 = vmatprep.subr.mxu0 0.0
  %1313 = vmatpush1.msra.mxu0 0.0
  %1314 = vmatprep.subr.mxu0 0.0
  %1315 = vmatpush1.msra.mxu0 0.0
  %1316 = vmatprep.subr.mxu0 0.0
  %1317 = vmatpush1.msra.mxu0 0.0
  %1318 = vmatprep.subr.mxu0 0.0
  %1319 = vmatpush1.msra.mxu0 0.0
  %1320 = vmatprep.subr.mxu0 0.0
  %1321 = vmatpush1.msra.mxu0 0.0
  %1322 = vmatprep.subr.mxu0 0.0
  %1323 = vmatpush1.msra.mxu0 0.0
  %1324 = vmatprep.subr.mxu0 0.0
  %1325 = vmatpush1.msra.mxu0 0.0
  %1326 = vmatprep.subr.mxu0 0.0
  %1327 = vmatpush1.msra.mxu0 0.0
  %1328 = vmatprep.subr.mxu0 0.0
  %1329 = vmatpush1.msra.mxu0 0.0
  %1330 = vmatprep.subr.mxu0 0.0
  %1331 = vmatpush1.msra.mxu0 0.0
  %1332 = vmatprep.subr.mxu0 0.0
  %1333 = vmatpush1.msra.mxu0 0.0
  %1334 = vmatprep.mubr.f32.mxu0 0.0
  %1335 = vmatmul.mubr.f32.gmra.mrb[0].mxu0 %v1268
  %v1336 = vpop.f32.mrb[0].mxu0
  %v1337 = vadd.f32 %v1265, %v1336
  %v1338 = vpop.f32.mrb[0].mxu0
  %1339 = vdwg.mxu0
  %v1340 = vmax.f32 %v1337, 0.0
  %v1342 = vsel %vm253, %v1340, 0
  %1344 = vmatprep.subr.mxu0 0.0
  %1345 = vmatpush1.xpose.msra.mxu0 %v812
  %1346 = vmatprep.subr.mxu0 0.0
  %1347 = vmatpush1.xpose.msra.mxu0 %v815
  %1348 = vmatprep.subr.mxu0 0.0
  %1349 = vmatpush1.xpose.msra.mxu0 %v818
  %1350 = vmatprep.subr.mxu0 0.0
  %1351 = vmatpush1.xpose.msra.mxu0 %v821
  %1352 = vmatprep.subr.mxu0 0.0
  %1353 = vmatpush1.xpose.msra.mxu0 %v824
  %1354 = vmatprep.subr.mxu0 0.0
  %1355 = vmatpush1.xpose.msra.mxu0 %v827
  %1356 = vmatprep.subr.mxu0 0.0
  %1357 = vmatpush1.xpose.msra.mxu0 %v830
  %1358 = vmatprep.subr.mxu0 0.0
  %1359 = vmatpush1.xpose.msra.mxu0 %v833
  %1360 = vmatprep.subr.mxu0 0.0
  %1361 = vmatpush1.xpose.msra.mxu0 %v836
  %1362 = vmatprep.subr.mxu0 0.0
  %1363 = vmatpush1.xpose.msra.mxu0 %v839
  %1364 = vmatprep.subr.mxu0 0.0
  %1365 = vmatpush1.xpose.msra.mxu0 %v842
  %1366 = vmatprep.subr.mxu0 0.0
  %1367 = vmatpush1.xpose.msra.mxu0 %v845
  %1368 = vmatprep.subr.mxu0 0.0
  %1369 = vmatpush1.xpose.msra.mxu0 %v848
  %1370 = vmatprep.subr.mxu0 0.0
  %1371 = vmatpush1.xpose.msra.mxu0 %v851
  %1372 = vmatprep.subr.mxu0 0.0
  %1373 = vmatpush1.xpose.msra.mxu0 %v854
  %1374 = vmatprep.subr.mxu0 0.0
  %1375 = vmatpush1.xpose.msra.mxu0 %v857
  %1376 = vmatprep.subr.mxu0 0.0
  %1377 = vmatpush1.xpose.msra.mxu0 0.0
  %1378 = vmatprep.subr.mxu0 0.0
  %1379 = vmatpush1.xpose.msra.mxu0 0.0
  %1380 = vmatprep.subr.mxu0 0.0
  %1381 = vmatpush1.xpose.msra.mxu0 0.0
  %1382 = vmatprep.subr.mxu0 0.0
  %1383 = vmatpush1.xpose.msra.mxu0 0.0
  %1384 = vmatprep.subr.mxu0 0.0
  %1385 = vmatpush1.xpose.msra.mxu0 0.0
  %1386 = vmatprep.subr.mxu0 0.0
  %1387 = vmatpush1.xpose.msra.mxu0 0.0
  %1388 = vmatprep.subr.mxu0 0.0
  %1389 = vmatpush1.xpose.msra.mxu0 0.0
  %1390 = vmatprep.subr.mxu0 0.0
  %1391 = vmatpush1.xpose.msra.mxu0 0.0
  %1392 = vmatprep.subr.mxu0 0.0
  %1393 = vmatpush1.xpose.msra.mxu0 0.0
  %1394 = vmatprep.subr.mxu0 0.0
  %1395 = vmatpush1.xpose.msra.mxu0 0.0
  %1396 = vmatprep.subr.mxu0 0.0
  %1397 = vmatpush1.xpose.msra.mxu0 0.0
  %1398 = vmatprep.subr.mxu0 0.0
  %1399 = vmatpush1.xpose.msra.mxu0 0.0
  %1400 = vmatprep.subr.mxu0 0.0
  %1401 = vmatpush1.xpose.msra.mxu0 0.0
  %1402 = vmatprep.subr.mxu0 0.0
  %1403 = vmatpush1.xpose.msra.mxu0 0.0
  %1404 = vmatprep.subr.mxu0 0.0
  %1405 = vmatpush1.xpose.msra.mxu0 0.0
  %1406 = vmatprep.subr.mxu0 0.0
  %1407 = vmatpush1.xpose.msra.mxu0 0.0
  %1408 = vmatprep.mubr.f32.mxu0 0.0
  %1409 = vmatmul.mubr.f32.gmra.mrb[0].mxu0 %v1342
  %v1410 = vpop.f32.mrb[0].mxu0
  %v1411 = vadd.f32 0.0, %v1410
  %v1412 = vpop.f32.mrb[0].mxu0
  %1413 = vdwg.mxu0
  %1414 = vst [vmem:[%s6] sm:$0x3] %v1411
  %1415 = vst [vmem:[%s6 + $0x2] sm:$0x3] %v1337
  // Predicated region
  $region26: #{forward.1} parent=0 // pred_check
    _
  $region27: #{forward.1} parent=0 // pred_check_branch
    %1417 = sbr.rel (0) target = $region29
  $region28: #{forward.1} parent=0 // pred_region
    _
  $region29: #{forward.1} parent=0 // pred_fallthru
    _
  // Predicated region
  $region30: #{forward.1} parent=0 // pred_check
    _
  $region31: #{forward.1} parent=0 // pred_check_branch
    %1419 = sbr.rel (0) target = $region33
  $region32: #{forward.1} parent=0 // pred_region
    _
  $region33: #{forward.1} parent=0 // pred_fallthru
    _

</llo_original>
